<compile_context>
chip_gen: v6e
topology: v6e:2x2x1
jax: 0.10.0
libtpu: 0.0.40
codegen_flags: <defaults>
</compile_context>

<pallas_src>
import functools
import math

import jax
import jax.numpy as jnp
from jax.experimental import pallas as pl
from jax.experimental.pallas import tpu as pltpu

PAD = 128   # lane-padded feature width (m=100, hidden=100, out=3 -> 128)
H = 100     # true hidden width
OUT = 3     # true output width


def _round_up(n, k):
    return ((n + k - 1) // k) * k


def _pad_to(a, shape):
    pads = [(0, t - s) for s, t in zip(a.shape, shape)]
    return jnp.pad(a, pads)


# ----------------------------- Pallas kernel ------------------------------ #
def _mlp_info_dropout_kernel(
    x_ref, noise_ref,
    w1c_ref, b1c_ref,          # fused first layer: [128, 256] = [w1 || wa1]
    w2_ref, b2_ref,            # encoder layer 2
    wa2_ref, ba2_ref,          # alpha branch layer 2
    wr_ref, br_ref,            # regression layer
    pred_ref, kl_ref,
    *, max_alpha, training, log_denom,
):
    x = x_ref[...]                                            # [TB, 128] bf16

    # Fused first layer: one [TB,128] x [128,256] bf16 matmul, f32 accumulate.
    h = jnp.dot(x, w1c_ref[...], preferred_element_type=jnp.float32) + b1c_ref[...]
    h = jnp.maximum(h, 0.0)
    h1 = h[:, :PAD]                                           # encoder branch
    a1 = h[:, PAD:]                                           # alpha branch

    feat = jnp.maximum(
        jnp.dot(h1.astype(jnp.bfloat16), w2_ref[...],
                preferred_element_type=jnp.float32) + b2_ref[...], 0.0)
    a2 = jnp.maximum(
        jnp.dot(a1.astype(jnp.bfloat16), wa2_ref[...],
                preferred_element_type=jnp.float32) + ba2_ref[...], 0.0)

    # alpha = 0.001 + max_alpha * (max_alpha * sigmoid(a2))
    # (max_alpha is applied twice, exactly as in the PyTorch forward)
    alpha = 0.001 + max_alpha * (max_alpha * jax.nn.sigmoid(a2))
    # kl = -log(alpha / (max_alpha + 0.001)) = log(max_alpha+0.001) - log(alpha)
    # NOTE: padded lanes 100..127 carry sigmoid(0)=0.5 values; they are sliced
    # off in the wrapper, and feat is exactly 0 there (zero-padded w2/b2 cols).
    kl_ref[...] = log_denom - jnp.log(alpha)

    # sample_lognormal(mean=0, sigma=alpha, sigma0): e = exp(alpha*sigma0*noise)
    if training:   # sigma0 == 1 ; in eval mode sigma0 == 0 -> e == 1, skip exp
        feat = feat * jnp.exp(alpha * noise_ref[...])

    pred_ref[...] = (
        jnp.dot(feat.astype(jnp.bfloat16), wr_ref[...],
                preferred_element_type=jnp.float32) + br_ref[...])


# ----------------------- One-time parameter prep --------------------------- #
def prepare_params(params):
    """Pad, fuse and cast parameters ONCE (hoisted out of the per-call path)."""
    (w1, b1, w2, b2, wa1, ba1, wa2, ba2, wr, br) = params

    def padw(w):
        return _pad_to(w, (PAD, PAD)).astype(jnp.bfloat16)

    def padb(b):
        return _pad_to(b.reshape(1, -1), (1, PAD)).astype(jnp.float32)

    # Fuse the two first-layer matrices that share the same LHS -> [128, 256].
    w1c = jnp.concatenate([padw(w1), padw(wa1)], axis=1)
    b1c = jnp.concatenate([padb(b1), padb(ba1)], axis=1)
    return (w1c, b1c, padw(w2), padb(b2), padw(wa2), padb(ba2), padw(wr), padb(br))


# ------------------------------ Wrapper ------------------------------------ #
def mlp_information_dropout(x, noise, padded_params, *, max_alpha=0.7, training=True):
    """x: [B, m] f32, noise: [B, 100] f32 std-normal. Returns (pred [B,3], kl [B,100])."""
    B, m = x.shape
    assert m <= PAD and noise.shape[1] <= PAD
    (w1c, b1c, w2p, b2p, wa2p, ba2p, wrp, brp) = padded_params

    # Batch tiling: row tile must be a multiple of 8 sublanes.
    Bp8 = _round_up(B, 8)
    TB = min(256, Bp8)
    Bp = _round_up(Bp8, TB)
    grid = (Bp // TB,)

    # Per-call activation padding only (weights were prepared at init).
    xp = _pad_to(x, (Bp, PAD)).astype(jnp.bfloat16)
    np_ = _pad_to(noise, (Bp, PAD)).astype(jnp.float32)

    kernel = functools.partial(
        _mlp_info_dropout_kernel,
        max_alpha=max_alpha, training=training,
        log_denom=math.log(max_alpha + 0.001))

    def row_spec():
        return pl.BlockSpec((TB, PAD), lambda i: (i, 0))

    def const_spec(shape):
        return pl.BlockSpec(shape, lambda i: (0, 0))

    weight_bytes = (int(w1c.size) + int(w2p.size) + int(wa2p.size) + int(wrp.size)) * 2 \
                 + (int(b1c.size) + int(b2p.size) + int(ba2p.size) + int(brp.size)) * 4
    cost = pl.CostEstimate(
        flops=2 * Bp * PAD * (5 * PAD),                 # 1x N=256 + 3x N=128 GEMMs
        transcendentals=3 * Bp * PAD,                   # sigmoid, log, exp
        bytes_accessed=weight_bytes + Bp * PAD * 2 + Bp * PAD * 4 + 2 * Bp * PAD * 4,
    )

    pred_pad, kl_pad = pl.pallas_call(
        kernel,
        grid=grid,
        out_shape=(
            jax.ShapeDtypeStruct((Bp, PAD), jnp.float32),
            jax.ShapeDtypeStruct((Bp, PAD), jnp.float32),
        ),
        in_specs=[
            row_spec(), row_spec(),
            const_spec((PAD, 2 * PAD)), const_spec((1, 2 * PAD)),
            const_spec((PAD, PAD)), const_spec((1, PAD)),
            const_spec((PAD, PAD)), const_spec((1, PAD)),
            const_spec((PAD, PAD)), const_spec((1, PAD)),
        ],
        out_specs=(row_spec(), row_spec()),
        compiler_params=pltpu.CompilerParams(dimension_semantics=("parallel",)),
        cost_estimate=cost,
    )(xp, np_, w1c, b1c, w2p, b2p, wa2p, ba2p, wrp, brp)

    return pred_pad[:B, :OUT], kl_pad[:B, :H]


# --------------------------- Parameter init -------------------------------- #
def init_params(key, m=100, hidden=100, out=3, std=0.001):
    """Matches PyTorch init: Linear weights ~ N(0, 0.001), biases = 0.
    Weights stored as [in, out] (transposed vs. torch's [out, in])."""
    ks = jax.random.split(key, 5)

    def lin(k, fan_in, fan_out):
        w = std * jax.random.normal(k, (fan_in, fan_out), dtype=jnp.float32)
        b = jnp.zeros((fan_out,), dtype=jnp.float32)
        return w, b

    w1, b1 = lin(ks[0], m, hidden)
    w2, b2 = lin(ks[1], hidden, hidden)
    wa1, ba1 = lin(ks[2], m, hidden)
    wa2, ba2 = lin(ks[3], hidden, hidden)
    wr, br = lin(ks[4], hidden, out)
    return (w1, b1, w2, b2, wa1, ba1, wa2, ba2, wr, br)


# ------------------------ Pure-JAX reference ------------------------------- #
def reference(x, noise, params, max_alpha=0.7, training=True):
    (w1, b1, w2, b2, wa1, ba1, wa2, ba2, wr, br) = params
    sigma0 = 1.0 if training else 0.0
    feat = jnp.maximum(jnp.maximum(x @ w1 + b1, 0.0) @ w2 + b2, 0.0)
    a = jnp.maximum(jnp.maximum(x @ wa1 + ba1, 0.0) @ wa2 + ba2, 0.0)
    alpha = max_alpha * jax.nn.sigmoid(a)
    alpha = 0.001 + max_alpha * alpha
    kl = -jnp.log(alpha / (max_alpha + 0.001))
    e = jnp.exp(alpha * sigma0 * noise)
    pred = (feat * e) @ wr + br
    return pred, kl


if __name__ == "__main__":
    B, m = 8, 100
    key = jax.random.PRNGKey(0)
    k_x, k_n, k_p = jax.random.split(key, 3)

    x = jax.random.normal(k_x, (B, m), dtype=jnp.float32)
    # Reparametrization noise (torch.normal(0,1) equivalent), fixed for determinism.
    # TODO(synk): torch samples the lognormal noise on-device inside forward();
    # here it is sampled host-side and passed in (pltpu PRNG could also be used).
    noise = jax.random.normal(k_n, (B, 100), dtype=jnp.float32)

    params = init_params(k_p, m=m)
    padded_params = prepare_params(params)          # one-time pad/fuse/bf16 cast

    pred, kl = mlp_information_dropout(x, noise, padded_params,
                                       max_alpha=0.7, training=True)
    jax.block_until_ready((pred, kl))

    pred_ref, kl_ref = reference(x, noise, params, max_alpha=0.7, training=True)
    assert pred.shape == (B, 3) and kl.shape == (B, 100)
    # bf16 matmul operands with f32 accumulation -> slightly looser tolerance
    # than the pure-f32 reference.
    assert jnp.allclose(pred, pred_ref, atol=1e-4, rtol=1e-3)
    assert jnp.allclose(kl, kl_ref, atol=1e-4, rtol=1e-3)

    print("KERNEL_OK")
</pallas_src>

<mosaic_0001>
module attributes {stable_mosaic.version = 11 : i64} {
  func.func @_mlp_info_dropout_kernel(%arg0: i32, %arg1: memref<8x128xbf16, #tpu.memory_space<vmem>>, %arg2: memref<8x128xf32, #tpu.memory_space<vmem>>, %arg3: memref<128x256xbf16, #tpu.memory_space<vmem>>, %arg4: memref<1x256xf32, #tpu.memory_space<vmem>>, %arg5: memref<128x128xbf16, #tpu.memory_space<vmem>>, %arg6: memref<1x128xf32, #tpu.memory_space<vmem>>, %arg7: memref<128x128xbf16, #tpu.memory_space<vmem>>, %arg8: memref<1x128xf32, #tpu.memory_space<vmem>>, %arg9: memref<128x128xbf16, #tpu.memory_space<vmem>>, %arg10: memref<1x128xf32, #tpu.memory_space<vmem>>, %arg11: memref<8x128xf32, #tpu.memory_space<vmem>>, %arg12: memref<8x128xf32, #tpu.memory_space<vmem>>) attributes {dimension_semantics = [#tpu.dimension_semantics<parallel>], iteration_bounds = array<i64: 1>, scalar_prefetch = 0 : i64, scratch_operands = 0 : i64, tpu.core_type = #tpu.core_type<tc>, window_params = [{transform_indices = @transform_0, window_bounds = array<i64: 8, 128>}, {transform_indices = @transform_1, window_bounds = array<i64: 8, 128>}, {pipeline_mode = #tpu.pipeline_mode<synchronous>, transform_indices = @transform_2, window_bounds = array<i64: 128, 256>}, {pipeline_mode = #tpu.pipeline_mode<synchronous>, transform_indices = @transform_3, window_bounds = array<i64: 1, 256>}, {pipeline_mode = #tpu.pipeline_mode<synchronous>, transform_indices = @transform_4, window_bounds = array<i64: 128, 128>}, {pipeline_mode = #tpu.pipeline_mode<synchronous>, transform_indices = @transform_5, window_bounds = array<i64: 1, 128>}, {pipeline_mode = #tpu.pipeline_mode<synchronous>, transform_indices = @transform_6, window_bounds = array<i64: 128, 128>}, {pipeline_mode = #tpu.pipeline_mode<synchronous>, transform_indices = @transform_7, window_bounds = array<i64: 1, 128>}, {pipeline_mode = #tpu.pipeline_mode<synchronous>, transform_indices = @transform_8, window_bounds = array<i64: 128, 128>}, {pipeline_mode = #tpu.pipeline_mode<synchronous>, transform_indices = @transform_9, window_bounds = array<i64: 1, 128>}, {transform_indices = @transform_10, window_bounds = array<i64: 8, 128>}, {transform_indices = @transform_11, window_bounds = array<i64: 8, 128>}]} {
    %c0 = arith.constant 0 : index
    %c0_0 = arith.constant 0 : index
    %0 = vector.load %arg1[%c0, %c0_0] : memref<8x128xbf16, #tpu.memory_space<vmem>>, vector<8x128xbf16>
    %c0_1 = arith.constant 0 : index
    %c0_2 = arith.constant 0 : index
    %1 = vector.load %arg3[%c0_1, %c0_2] : memref<128x256xbf16, #tpu.memory_space<vmem>>, vector<128x256xbf16>
    %cst = arith.constant dense<0.000000e+00> : vector<8x256xf32>
    %2 = tpu.matmul %0, %1, %cst {dimension_numbers = #tpu.dot_dimension_numbers<[1], [0], [0], [1], [0, 0, 1, 1], [], []>} : vector<8x128xbf16>, vector<128x256xbf16>, vector<8x256xf32> -> vector<8x256xf32>
    %c0_3 = arith.constant 0 : index
    %c0_4 = arith.constant 0 : index
    %3 = vector.load %arg4[%c0_3, %c0_4] : memref<1x256xf32, #tpu.memory_space<vmem>>, vector<1x256xf32>
    %4 = vector.broadcast %3 : vector<1x256xf32> to vector<8x256xf32>
    %5 = arith.addf %2, %4 : vector<8x256xf32>
    %cst_5 = arith.constant 0.000000e+00 : f32
    %6 = vector.broadcast %cst_5 : f32 to vector<8x256xf32>
    %7 = arith.maximumf %5, %6 : vector<8x256xf32>
    %8 = vector.extract_strided_slice %7 {offsets = [0, 0], sizes = [8, 128], strides = [1, 1]} : vector<8x256xf32> to vector<8x128xf32>
    %9 = vector.extract_strided_slice %7 {offsets = [0, 128], sizes = [8, 128], strides = [1, 1]} : vector<8x256xf32> to vector<8x128xf32>
    %10 = arith.truncf %8 : vector<8x128xf32> to vector<8x128xbf16>
    %c0_6 = arith.constant 0 : index
    %c0_7 = arith.constant 0 : index
    %11 = vector.load %arg5[%c0_6, %c0_7] : memref<128x128xbf16, #tpu.memory_space<vmem>>, vector<128x128xbf16>
    %cst_8 = arith.constant dense<0.000000e+00> : vector<8x128xf32>
    %12 = tpu.matmul %10, %11, %cst_8 {dimension_numbers = #tpu.dot_dimension_numbers<[1], [0], [0], [1], [0, 0, 1, 1], [], []>} : vector<8x128xbf16>, vector<128x128xbf16>, vector<8x128xf32> -> vector<8x128xf32>
    %c0_9 = arith.constant 0 : index
    %c0_10 = arith.constant 0 : index
    %13 = vector.load %arg6[%c0_9, %c0_10] : memref<1x128xf32, #tpu.memory_space<vmem>>, vector<1x128xf32>
    %14 = vector.broadcast %13 : vector<1x128xf32> to vector<8x128xf32>
    %15 = arith.addf %12, %14 : vector<8x128xf32>
    %cst_11 = arith.constant 0.000000e+00 : f32
    %16 = vector.broadcast %cst_11 : f32 to vector<8x128xf32>
    %17 = arith.maximumf %15, %16 : vector<8x128xf32>
    %18 = arith.truncf %9 : vector<8x128xf32> to vector<8x128xbf16>
    %c0_12 = arith.constant 0 : index
    %c0_13 = arith.constant 0 : index
    %19 = vector.load %arg7[%c0_12, %c0_13] : memref<128x128xbf16, #tpu.memory_space<vmem>>, vector<128x128xbf16>
    %cst_14 = arith.constant dense<0.000000e+00> : vector<8x128xf32>
    %20 = tpu.matmul %18, %19, %cst_14 {dimension_numbers = #tpu.dot_dimension_numbers<[1], [0], [0], [1], [0, 0, 1, 1], [], []>} : vector<8x128xbf16>, vector<128x128xbf16>, vector<8x128xf32> -> vector<8x128xf32>
    %c0_15 = arith.constant 0 : index
    %c0_16 = arith.constant 0 : index
    %21 = vector.load %arg8[%c0_15, %c0_16] : memref<1x128xf32, #tpu.memory_space<vmem>>, vector<1x128xf32>
    %22 = vector.broadcast %21 : vector<1x128xf32> to vector<8x128xf32>
    %23 = arith.addf %20, %22 : vector<8x128xf32>
    %cst_17 = arith.constant 0.000000e+00 : f32
    %24 = vector.broadcast %cst_17 : f32 to vector<8x128xf32>
    %25 = arith.maximumf %23, %24 : vector<8x128xf32>
    %26 = arith.negf %25 : vector<8x128xf32>
    %27 = math.exp %26 : vector<8x128xf32>
    %cst_18 = arith.constant 1.000000e+00 : f32
    %28 = vector.broadcast %cst_18 : f32 to vector<8x128xf32>
    %29 = arith.addf %28, %27 : vector<8x128xf32>
    %30 = arith.divf %28, %29 : vector<8x128xf32>
    %cst_19 = arith.constant 0.699999988 : f32
    %31 = vector.broadcast %cst_19 : f32 to vector<8x128xf32>
    %32 = arith.mulf %31, %30 : vector<8x128xf32>
    %cst_20 = arith.constant 0.699999988 : f32
    %33 = vector.broadcast %cst_20 : f32 to vector<8x128xf32>
    %34 = arith.mulf %33, %32 : vector<8x128xf32>
    %cst_21 = arith.constant 1.000000e-03 : f32
    %35 = vector.broadcast %cst_21 : f32 to vector<8x128xf32>
    %36 = arith.addf %35, %34 : vector<8x128xf32>
    %37 = math.log %36 : vector<8x128xf32>
    %cst_22 = arith.constant -0.355247378 : f32
    %38 = vector.broadcast %cst_22 : f32 to vector<8x128xf32>
    %39 = arith.subf %38, %37 : vector<8x128xf32>
    %c0_23 = arith.constant 0 : index
    %c0_24 = arith.constant 0 : index
    %40 = vector.load %arg12[%c0_23, %c0_24] : memref<8x128xf32, #tpu.memory_space<vmem>>, vector<8x128xf32>
    tpu.vector_store %arg12[%c0_23, %c0_24], %39 {strides = array<i32>} : memref<8x128xf32, #tpu.memory_space<vmem>>, vector<8x128xf32>,
    %c0_25 = arith.constant 0 : index
    %c0_26 = arith.constant 0 : index
    %41 = vector.load %arg2[%c0_25, %c0_26] : memref<8x128xf32, #tpu.memory_space<vmem>>, vector<8x128xf32>
    %42 = arith.mulf %36, %41 : vector<8x128xf32>
    %43 = math.exp %42 : vector<8x128xf32>
    %44 = arith.mulf %17, %43 : vector<8x128xf32>
    %45 = arith.truncf %44 : vector<8x128xf32> to vector<8x128xbf16>
    %c0_27 = arith.constant 0 : index
    %c0_28 = arith.constant 0 : index
    %46 = vector.load %arg9[%c0_27, %c0_28] : memref<128x128xbf16, #tpu.memory_space<vmem>>, vector<128x128xbf16>
    %cst_29 = arith.constant dense<0.000000e+00> : vector<8x128xf32>
    %47 = tpu.matmul %45, %46, %cst_29 {dimension_numbers = #tpu.dot_dimension_numbers<[1], [0], [0], [1], [0, 0, 1, 1], [], []>} : vector<8x128xbf16>, vector<128x128xbf16>, vector<8x128xf32> -> vector<8x128xf32>
    %c0_30 = arith.constant 0 : index
    %c0_31 = arith.constant 0 : index
    %48 = vector.load %arg10[%c0_30, %c0_31] : memref<1x128xf32, #tpu.memory_space<vmem>>, vector<1x128xf32>
    %49 = vector.broadcast %48 : vector<1x128xf32> to vector<8x128xf32>
    %50 = arith.addf %47, %49 : vector<8x128xf32>
    %c0_32 = arith.constant 0 : index
    %c0_33 = arith.constant 0 : index
    %51 = vector.load %arg11[%c0_32, %c0_33] : memref<8x128xf32, #tpu.memory_space<vmem>>, vector<8x128xf32>
    tpu.vector_store %arg11[%c0_32, %c0_33], %50 {strides = array<i32>} : memref<8x128xf32, #tpu.memory_space<vmem>>, vector<8x128xf32>,
    return
  }
  func.func @transform_0(%arg0: i32) -> (i32, i32) {
    %c0_i32 = arith.constant 0 : i32
    %c0_i32_0 = arith.constant 0 : i32
    return %arg0, %c0_i32 : i32, i32
  }
  func.func @transform_1(%arg0: i32) -> (i32, i32) {
    %c0_i32 = arith.constant 0 : i32
    %c0_i32_0 = arith.constant 0 : i32
    return %arg0, %c0_i32 : i32, i32
  }
  func.func @transform_2(%arg0: i32) -> (i32, i32) {
    %c0_i32 = arith.constant 0 : i32
    %c0_i32_0 = arith.constant 0 : i32
    %c0_i32_1 = arith.constant 0 : i32
    return %c0_i32, %c0_i32_0 : i32, i32
  }
  func.func @transform_3(%arg0: i32) -> (i32, i32) {
    %c0_i32 = arith.constant 0 : i32
    %c0_i32_0 = arith.constant 0 : i32
    %c0_i32_1 = arith.constant 0 : i32
    return %c0_i32, %c0_i32_0 : i32, i32
  }
  func.func @transform_4(%arg0: i32) -> (i32, i32) {
    %c0_i32 = arith.constant 0 : i32
    %c0_i32_0 = arith.constant 0 : i32
    %c0_i32_1 = arith.constant 0 : i32
    return %c0_i32, %c0_i32_0 : i32, i32
  }
  func.func @transform_5(%arg0: i32) -> (i32, i32) {
    %c0_i32 = arith.constant 0 : i32
    %c0_i32_0 = arith.constant 0 : i32
    %c0_i32_1 = arith.constant 0 : i32
    return %c0_i32, %c0_i32_0 : i32, i32
  }
  func.func @transform_6(%arg0: i32) -> (i32, i32) {
    %c0_i32 = arith.constant 0 : i32
    %c0_i32_0 = arith.constant 0 : i32
    %c0_i32_1 = arith.constant 0 : i32
    return %c0_i32, %c0_i32_0 : i32, i32
  }
  func.func @transform_7(%arg0: i32) -> (i32, i32) {
    %c0_i32 = arith.constant 0 : i32
    %c0_i32_0 = arith.constant 0 : i32
    %c0_i32_1 = arith.constant 0 : i32
    return %c0_i32, %c0_i32_0 : i32, i32
  }
  func.func @transform_8(%arg0: i32) -> (i32, i32) {
    %c0_i32 = arith.constant 0 : i32
    %c0_i32_0 = arith.constant 0 : i32
    %c0_i32_1 = arith.constant 0 : i32
    return %c0_i32, %c0_i32_0 : i32, i32
  }
  func.func @transform_9(%arg0: i32) -> (i32, i32) {
    %c0_i32 = arith.constant 0 : i32
    %c0_i32_0 = arith.constant 0 : i32
    %c0_i32_1 = arith.constant 0 : i32
    return %c0_i32, %c0_i32_0 : i32, i32
  }
  func.func @transform_10(%arg0: i32) -> (i32, i32) {
    %c0_i32 = arith.constant 0 : i32
    %c0_i32_0 = arith.constant 0 : i32
    return %arg0, %c0_i32 : i32, i32
  }
  func.func @transform_11(%arg0: i32) -> (i32, i32) {
    %c0_i32 = arith.constant 0 : i32
    %c0_i32_0 = arith.constant 0 : i32
    return %arg0, %c0_i32 : i32, i32
  }
}

</mosaic_0001>

<llo_original>
// kernel: tpu_custom_call.1
$region0: #{tpu_custom_call.1}
  #allocation0 [shape = 'u32[]', space=smem, size = 0x4, offset = 0x4, fixed_abs, tag = 'smem constant byte address 0x4 - core index']
  #allocation1 [shape = 'u32[144,128]{1,0:T(1,128)}', space=vmem, size = 0x12000, scoped, tag = 'internal scratch']
  %s0 = inlined_call_operand.hbm [shape: bf16[8,128], index: 0, kind: input, shape index: {}]
  %s1 = inlined_call_operand.hbm [shape: f32[8,128], index: 1, kind: input, shape index: {}]
  %s2 = inlined_call_operand.hbm [shape: bf16[128,256], index: 2, kind: input, shape index: {}]
  %s3 = inlined_call_operand.vmem [shape: f32[1,256], index: 3, kind: input, shape index: {}]
  %s4 = inlined_call_operand.hbm [shape: bf16[128,128], index: 4, kind: input, shape index: {}]
  %s5 = inlined_call_operand.vmem [shape: f32[1,128], index: 5, kind: input, shape index: {}]
  %s6 = inlined_call_operand.hbm [shape: bf16[128,128], index: 6, kind: input, shape index: {}]
  %s7 = inlined_call_operand.vmem [shape: f32[1,128], index: 7, kind: input, shape index: {}]
  %s8 = inlined_call_operand.hbm [shape: bf16[128,128], index: 8, kind: input, shape index: {}]
  %s9 = inlined_call_operand.vmem [shape: f32[1,128], index: 9, kind: input, shape index: {}]
  %s10 = inlined_call_operand.hbm [shape: f32[8,128], index: 10, kind: output, shape index: {0}]
  %s11 = inlined_call_operand.hbm [shape: f32[8,128], index: 11, kind: output, shape index: {1}]
  %12 = xla_tuple %s10, %s11
  %s13 = sld [smem:[#allocation0]]
  $region82: #{tpu_custom_call.1} parent=0
    _
  %s15 = ssub.s32 1, %s13
  %s16 = scalar_select 0, %s15, %s13
  $region1: #{tpu_custom_call.1} parent=0
    #allocation2 [shape = 'u8[2048]{0}', space=vmem, size = 0x800, scoped, tag = 'input window, operand 0, single buffered']
    #allocation3 [shape = 's32[1]{0}', space=sflag, size = 0x4, scoped, tag = 'scoped memory for tpu_custom_call.1']
    #allocation4 [shape = 's32[1]{0}', space=sflag, size = 0x4, scoped, tag = 'scoped memory for tpu_custom_call.1']
    #allocation5 [shape = 'u8[4096]{0}', space=vmem, size = 0x1000, scoped, tag = 'input window, operand 1, single buffered']
    #allocation6 [shape = 's32[1]{0}', space=sflag, size = 0x4, scoped, tag = 'scoped memory for tpu_custom_call.1']
    #allocation7 [shape = 'u8[65536]{0}', space=vmem, size = 0x10000, scoped, tag = 'input window, operand 2, single buffered']
    #allocation8 [shape = 'u8[32768]{0}', space=vmem, size = 0x8000, scoped, tag = 'input window, operand 4, single buffered']
    #allocation9 [shape = 's32[1]{0}', space=sflag, size = 0x4, scoped, tag = 'scoped memory for tpu_custom_call.1']
    #allocation10 [shape = 'u8[32768]{0}', space=vmem, size = 0x8000, scoped, tag = 'input window, operand 6, single buffered']
    #allocation11 [shape = 'u8[32768]{0}', space=vmem, size = 0x8000, scoped, tag = 'input window, operand 8, single buffered']
    #allocation12 [shape = 's32[1]{0}', space=sflag, size = 0x4, scoped, tag = 'scoped memory for tpu_custom_call.1']
    #allocation13 [shape = 'u8[4096]{0}', space=vmem, size = 0x1000, scoped, tag = 'output window, operand 0, single buffered']
    #allocation14 [shape = 'u8[4096]{0}', space=vmem, size = 0x1000, scoped, tag = 'output window, operand 1, single buffered']
    #allocation15 [shape = 's32[1]{0}', space=sflag, size = 0x4, scoped, tag = 'scoped memory for tpu_custom_call.1']
    %17 = vsyncpa [#allocation3], 0
    %18 = vsyncpa [#allocation6], 0
    %19 = vsyncpa [#allocation9], 0
    %20 = vsyncpa [#allocation12], 0
    %21 = vsyncpa [#allocation4], 0
    %22 = vsyncpa [#allocation15], 0
    // Predicated region
    $region2: #{tpu_custom_call.1} parent=1 // pred_check
      _
    $region3: #{tpu_custom_call.1} parent=1 // pred_check_branch
      %24 = sbr.rel (0) target = $region5
    $region4: #{tpu_custom_call.1} parent=1 // pred_region
      %s26 = ssub.s32 64, 64
      %27 = vsyncadd [#allocation3], %s26
      %s29 = sshll.u32 [#allocation2], 4
      %s30 = int_to_ptr.vmem [resolvable:$true] %s29
      %32 = dma.hbm_to_vmem [thread:$0]  %s0, 64, %s30, [#allocation3]
    $region5: #{tpu_custom_call.1} parent=1 // pred_fallthru
      _
    // Predicated region
    $region6: #{tpu_custom_call.1} parent=1 // pred_check
      _
    $region7: #{tpu_custom_call.1} parent=1 // pred_check_branch
      %34 = sbr.rel (0) target = $region9
    $region8: #{tpu_custom_call.1} parent=1 // pred_region
      %s36 = ssub.s32 128, 128
      %37 = vsyncadd [#allocation6], %s36
      %s39 = sshll.u32 [#allocation5], 4
      %s40 = int_to_ptr.vmem [resolvable:$true] %s39
      %42 = dma.hbm_to_vmem [thread:$0]  %s1, 128, %s40, [#allocation6]
    $region9: #{tpu_custom_call.1} parent=1 // pred_fallthru
      _
    // Predicated region
    $region10: #{tpu_custom_call.1} parent=1 // pred_check
      _
    $region11: #{tpu_custom_call.1} parent=1 // pred_check_branch
      %44 = sbr.rel (0) target = $region13
    $region12: #{tpu_custom_call.1} parent=1 // pred_region
      %s46 = ssub.s32 2048, 2048
      %47 = vsyncadd [#allocation6], %s46
      %s48 = sshll.u32 [#allocation7], 4
      %s49 = int_to_ptr.vmem [resolvable:$true] %s48
      %54 = dma.hbm_to_vmem [thread:$0]  %s2, 2048, %s49, [#allocation6], 128, 128, 8
    $region13: #{tpu_custom_call.1} parent=1 // pred_fallthru
      _
    // Predicated region
    $region14: #{tpu_custom_call.1} parent=1 // pred_check
      _
    $region15: #{tpu_custom_call.1} parent=1 // pred_check_branch
      %56 = sbr.rel (0) target = $region17
    $region16: #{tpu_custom_call.1} parent=1 // pred_region
      _
    $region17: #{tpu_custom_call.1} parent=1 // pred_fallthru
      _
    // Predicated region
    $region18: #{tpu_custom_call.1} parent=1 // pred_check
      _
    $region19: #{tpu_custom_call.1} parent=1 // pred_check_branch
      %58 = sbr.rel (0) target = $region21
    $region20: #{tpu_custom_call.1} parent=1 // pred_region
      %s60 = ssub.s32 1024, 1024
      %61 = vsyncadd [#allocation9], %s60
      %s62 = sshll.u32 [#allocation8], 4
      %s63 = int_to_ptr.vmem [resolvable:$true] %s62
      %68 = dma.hbm_to_vmem [thread:$0]  %s4, 1024, %s63, [#allocation9], 64, 64, 4
    $region21: #{tpu_custom_call.1} parent=1 // pred_fallthru
      _
    // Predicated region
    $region22: #{tpu_custom_call.1} parent=1 // pred_check
      _
    $region23: #{tpu_custom_call.1} parent=1 // pred_check_branch
      %70 = sbr.rel (0) target = $region25
    $region24: #{tpu_custom_call.1} parent=1 // pred_region
      _
    $region25: #{tpu_custom_call.1} parent=1 // pred_fallthru
      _
    // Predicated region
    $region26: #{tpu_custom_call.1} parent=1 // pred_check
      _
    $region27: #{tpu_custom_call.1} parent=1 // pred_check_branch
      %72 = sbr.rel (0) target = $region29
    $region28: #{tpu_custom_call.1} parent=1 // pred_region
      %s74 = ssub.s32 1024, 1024
      %75 = vsyncadd [#allocation9], %s74
      %s76 = sshll.u32 [#allocation10], 4
      %s77 = int_to_ptr.vmem [resolvable:$true] %s76
      %82 = dma.hbm_to_vmem [thread:$0]  %s6, 1024, %s77, [#allocation9], 64, 64, 4
    $region29: #{tpu_custom_call.1} parent=1 // pred_fallthru
      _
    // Predicated region
    $region30: #{tpu_custom_call.1} parent=1 // pred_check
      _
    $region31: #{tpu_custom_call.1} parent=1 // pred_check_branch
      %84 = sbr.rel (0) target = $region33
    $region32: #{tpu_custom_call.1} parent=1 // pred_region
      _
    $region33: #{tpu_custom_call.1} parent=1 // pred_fallthru
      _
    // Predicated region
    $region34: #{tpu_custom_call.1} parent=1 // pred_check
      _
    $region35: #{tpu_custom_call.1} parent=1 // pred_check_branch
      %86 = sbr.rel (0) target = $region37
    $region36: #{tpu_custom_call.1} parent=1 // pred_region
      %s88 = ssub.s32 1024, 1024
      %89 = vsyncadd [#allocation12], %s88
      %s90 = sshll.u32 [#allocation11], 4
      %s91 = int_to_ptr.vmem [resolvable:$true] %s90
      %96 = dma.hbm_to_vmem [thread:$0]  %s8, 1024, %s91, [#allocation12], 64, 64, 4
    $region37: #{tpu_custom_call.1} parent=1 // pred_fallthru
      _
    // Predicated region
    $region38: #{tpu_custom_call.1} parent=1 // pred_check
      _
    $region39: #{tpu_custom_call.1} parent=1 // pred_check_branch
      %98 = sbr.rel (0) target = $region41
    $region40: #{tpu_custom_call.1} parent=1 // pred_region
      _
    $region41: #{tpu_custom_call.1} parent=1 // pred_fallthru
      _
    // Predicated region
    $region42: #{tpu_custom_call.1} parent=1 // pred_check
      _
    $region43: #{tpu_custom_call.1} parent=1 // pred_check_branch
      %100 = sbr.rel (0) target = $region45
    $region44: #{tpu_custom_call.1} parent=1 // pred_region
      %101 = dma.done [#allocation3], 64
    $region45: #{tpu_custom_call.1} parent=1 // pred_fallthru
      _
    // Predicated region
    $region46: #{tpu_custom_call.1} parent=1 // pred_check
      _
    $region47: #{tpu_custom_call.1} parent=1 // pred_check_branch
      %103 = sbr.rel (0) target = $region49
    $region48: #{tpu_custom_call.1} parent=1 // pred_region
      %104 = dma.done [#allocation6], 128
    $region49: #{tpu_custom_call.1} parent=1 // pred_fallthru
      _
    // Predicated region
    $region50: #{tpu_custom_call.1} parent=1 // pred_check
      _
    $region51: #{tpu_custom_call.1} parent=1 // pred_check_branch
      %106 = sbr.rel (0) target = $region53
    $region52: #{tpu_custom_call.1} parent=1 // pred_region
      %107 = dma.done [#allocation6], 2048
    $region53: #{tpu_custom_call.1} parent=1 // pred_fallthru
      _
    // Predicated region
    $region54: #{tpu_custom_call.1} parent=1 // pred_check
      _
    $region55: #{tpu_custom_call.1} parent=1 // pred_check_branch
      %109 = sbr.rel (0) target = $region57
    $region56: #{tpu_custom_call.1} parent=1 // pred_region
      %110 = dma.done [#allocation9], 1024
    $region57: #{tpu_custom_call.1} parent=1 // pred_fallthru
      _
    // Predicated region
    $region58: #{tpu_custom_call.1} parent=1 // pred_check
      _
    $region59: #{tpu_custom_call.1} parent=1 // pred_check_branch
      %112 = sbr.rel (0) target = $region61
    $region60: #{tpu_custom_call.1} parent=1 // pred_region
      %113 = dma.done [#allocation9], 1024
    $region61: #{tpu_custom_call.1} parent=1 // pred_fallthru
      _
    // Predicated region
    $region62: #{tpu_custom_call.1} parent=1 // pred_check
      _
    $region63: #{tpu_custom_call.1} parent=1 // pred_check_branch
      %115 = sbr.rel (0) target = $region65
    $region64: #{tpu_custom_call.1} parent=1 // pred_region
      %116 = dma.done [#allocation12], 1024
    $region65: #{tpu_custom_call.1} parent=1 // pred_fallthru
      _
    %v118 = vld [vmem:[#allocation2] sm:$0xf]
    %v119 = vld [vmem:[#allocation7] sm:$0xff]
    %v120 = vld [vmem:[#allocation7 + $0x8] sm:$0xff]
    %v121 = vld [vmem:[#allocation7 + $0x10] sm:$0xff]
    %v122 = vld [vmem:[#allocation7 + $0x18] sm:$0xff]
    %v123 = vld [vmem:[#allocation7 + $0x20] sm:$0xff]
    %v124 = vld [vmem:[#allocation7 + $0x28] sm:$0xff]
    %v125 = vld [vmem:[#allocation7 + $0x30] sm:$0xff]
    %v126 = vld [vmem:[#allocation7 + $0x38] sm:$0xff]
    %v127 = vld [vmem:[#allocation7 + $0x40] sm:$0xff]
    %v128 = vld [vmem:[#allocation7 + $0x48] sm:$0xff]
    %v129 = vld [vmem:[#allocation7 + $0x50] sm:$0xff]
    %v130 = vld [vmem:[#allocation7 + $0x58] sm:$0xff]
    %v131 = vld [vmem:[#allocation7 + $0x60] sm:$0xff]
    %v132 = vld [vmem:[#allocation7 + $0x68] sm:$0xff]
    %v133 = vld [vmem:[#allocation7 + $0x70] sm:$0xff]
    %v134 = vld [vmem:[#allocation7 + $0x78] sm:$0xff]
    %v135 = vld [vmem:[%s3] sm:$0x3]
    %v137 = vlaneseq
    %v138 = vshrl.u32 %v137, 7
    %v139 = vsub.s32 0, %v138
    %v140 = vrot.slane %v135, %v139
    %v141 = vlaneseq
    %v142 = vshrl.u32 %v141, 7
    %v143 = vsub.s32 1, %v142
    %v144 = vrot.slane %v135, %v143
    %v163 = vunpack.c.l.b16 %v119
    %v164 = vunpack.c.h.b16 %v119
    %v165 = vunpack.c.l.b16 %v120
    %v166 = vunpack.c.h.b16 %v120
    %v167 = vunpack.c.l.b16 %v121
    %v168 = vunpack.c.h.b16 %v121
    %v169 = vunpack.c.l.b16 %v122
    %v170 = vunpack.c.h.b16 %v122
    %v171 = vunpack.c.l.b16 %v123
    %v172 = vunpack.c.h.b16 %v123
    %v173 = vunpack.c.l.b16 %v124
    %v174 = vunpack.c.h.b16 %v124
    %v175 = vunpack.c.l.b16 %v125
    %v176 = vunpack.c.h.b16 %v125
    %v177 = vunpack.c.l.b16 %v126
    %v178 = vunpack.c.h.b16 %v126
    %v179 = vunpack.c.l.b16 %v127
    %v180 = vunpack.c.h.b16 %v127
    %v181 = vunpack.c.l.b16 %v128
    %v182 = vunpack.c.h.b16 %v128
    %v183 = vunpack.c.l.b16 %v129
    %v184 = vunpack.c.h.b16 %v129
    %v185 = vunpack.c.l.b16 %v130
    %v186 = vunpack.c.h.b16 %v130
    %v187 = vunpack.c.l.b16 %v131
    %v188 = vunpack.c.h.b16 %v131
    %v189 = vunpack.c.l.b16 %v132
    %v190 = vunpack.c.h.b16 %v132
    %v191 = vunpack.c.l.b16 %v133
    %v192 = vunpack.c.h.b16 %v133
    %v193 = vunpack.c.l.b16 %v134
    %v194 = vunpack.c.h.b16 %v134
    %v195 = vpack.c.b16 %v165, %v163
    %v196 = vpack.c.b16 %v166, %v164
    %v197 = vpack.c.b16 %v169, %v167
    %v198 = vpack.c.b16 %v170, %v168
    %v199 = vpack.c.b16 %v173, %v171
    %v200 = vpack.c.b16 %v174, %v172
    %v201 = vpack.c.b16 %v177, %v175
    %v202 = vpack.c.b16 %v178, %v176
    %v203 = vpack.c.b16 %v181, %v179
    %v204 = vpack.c.b16 %v182, %v180
    %v205 = vpack.c.b16 %v185, %v183
    %v206 = vpack.c.b16 %v186, %v184
    %v207 = vpack.c.b16 %v189, %v187
    %v208 = vpack.c.b16 %v190, %v188
    %v209 = vpack.c.b16 %v193, %v191
    %v210 = vpack.c.b16 %v194, %v192
    %227 = vmatprep.subr.bf16.mxu0 %v210
    %228 = vmatpush1.bf16.msra.mxu0 %v209
    %229 = vmatprep.subr.bf16.mxu0 %v208
    %230 = vmatpush1.bf16.msra.mxu0 %v207
    %231 = vmatprep.subr.bf16.mxu0 %v206
    %232 = vmatpush1.bf16.msra.mxu0 %v205
    %233 = vmatprep.subr.bf16.mxu0 %v204
    %234 = vmatpush1.bf16.msra.mxu0 %v203
    %235 = vmatprep.subr.bf16.mxu0 %v202
    %236 = vmatpush1.bf16.msra.mxu0 %v201
    %237 = vmatprep.subr.bf16.mxu0 %v200
    %238 = vmatpush1.bf16.msra.mxu0 %v199
    %239 = vmatprep.subr.bf16.mxu0 %v198
    %240 = vmatpush1.bf16.msra.mxu0 %v197
    %241 = vmatprep.subr.bf16.mxu0 %v196
    %242 = vmatpush1.bf16.msra.mxu0 %v195
    %243 = vmatprep.subr.bf16.mxu0 0
    %244 = vmatpush2.bf16.msra.mxu0 0
    %245 = vmatprep.subr.bf16.mxu0 0
    %246 = vmatpush2.bf16.msra.mxu0 0
    %247 = vmatprep.subr.bf16.mxu0 0
    %248 = vmatpush2.bf16.msra.mxu0 0
    %249 = vmatprep.subr.bf16.mxu0 0
    %250 = vmatpush2.bf16.msra.mxu0 0
    %251 = vmatprep.subr.bf16.mxu0 0
    %252 = vmatpush2.bf16.msra.mxu0 0
    %253 = vmatprep.subr.bf16.mxu0 0
    %254 = vmatpush2.bf16.msra.mxu0 0
    %255 = vmatprep.subr.bf16.mxu0 0
    %256 = vmatpush2.bf16.msra.mxu0 0
    %257 = vmatprep.subr.bf16.mxu0 0
    %258 = vmatpush2.bf16.msra.mxu0 0
    %259 = vmatprep.mubr.bf16.mxu0 0
    %260 = vmatmul.mubr.bf16.gmra.mxu0 %v118
    %v261 = vpop.f32.mrf.mxu0
    %v262 = vadd.f32 %v140, %v261
    %v263 = vpop.f32.mrf.mxu0
    %v264 = vadd.f32 %v144, %v263
    %v265 = vpop.f32.mrf.mxu0
    %v266 = vpop.f32.mrf.mxu0
    %267 = vdwg.mxu0
    %v268 = vmax.f32 %v262, 0.0
    %v269 = vmax.f32 %v264, 0.0
    %v270 = vpack.c.bf16 %v268, %v268
    %v271 = vld [vmem:[#allocation8] sm:$0xf]
    %v272 = vld [vmem:[#allocation8 + $0x4] sm:$0xf]
    %v273 = vld [vmem:[#allocation8 + $0x8] sm:$0xf]
    %v274 = vld [vmem:[#allocation8 + $0xc] sm:$0xf]
    %v275 = vld [vmem:[#allocation8 + $0x10] sm:$0xf]
    %v276 = vld [vmem:[#allocation8 + $0x14] sm:$0xf]
    %v277 = vld [vmem:[#allocation8 + $0x18] sm:$0xf]
    %v278 = vld [vmem:[#allocation8 + $0x1c] sm:$0xf]
    %v279 = vld [vmem:[#allocation8 + $0x20] sm:$0xf]
    %v280 = vld [vmem:[#allocation8 + $0x24] sm:$0xf]
    %v281 = vld [vmem:[#allocation8 + $0x28] sm:$0xf]
    %v282 = vld [vmem:[#allocation8 + $0x2c] sm:$0xf]
    %v283 = vld [vmem:[#allocation8 + $0x30] sm:$0xf]
    %v284 = vld [vmem:[#allocation8 + $0x34] sm:$0xf]
    %v285 = vld [vmem:[#allocation8 + $0x38] sm:$0xf]
    %v286 = vld [vmem:[#allocation8 + $0x3c] sm:$0xf]
    %v287 = vld [vmem:[%s5] sm:$0x1]
    %v289 = vlaneseq
    %v290 = vshrl.u32 %v289, 7
    %v291 = vsub.s32 0, %v290
    %v292 = vrot.slane %v287, %v291
    %v310 = vunpack.c.l.b16 %v271
    %v311 = vunpack.c.l.b16 %v272
    %v312 = vunpack.c.l.b16 %v273
    %v313 = vunpack.c.l.b16 %v274
    %v314 = vunpack.c.l.b16 %v275
    %v315 = vunpack.c.l.b16 %v276
    %v316 = vunpack.c.l.b16 %v277
    %v317 = vunpack.c.l.b16 %v278
    %v318 = vunpack.c.l.b16 %v279
    %v319 = vunpack.c.l.b16 %v280
    %v320 = vunpack.c.l.b16 %v281
    %v321 = vunpack.c.l.b16 %v282
    %v322 = vunpack.c.l.b16 %v283
    %v323 = vunpack.c.l.b16 %v284
    %v324 = vunpack.c.l.b16 %v285
    %v325 = vunpack.c.l.b16 %v286
    %v326 = vpack.c.b16 %v311, %v310
    %v327 = vpack.c.b16 %v313, %v312
    %v328 = vpack.c.b16 %v315, %v314
    %v329 = vpack.c.b16 %v317, %v316
    %v330 = vpack.c.b16 %v319, %v318
    %v331 = vpack.c.b16 %v321, %v320
    %v332 = vpack.c.b16 %v323, %v322
    %v333 = vpack.c.b16 %v325, %v324
    %342 = vmatprep.subr.bf16.mxu0 0
    %343 = vmatpush1.bf16.msra.mxu0 %v333
    %344 = vmatprep.subr.bf16.mxu0 0
    %345 = vmatpush1.bf16.msra.mxu0 %v332
    %346 = vmatprep.subr.bf16.mxu0 0
    %347 = vmatpush1.bf16.msra.mxu0 %v331
    %348 = vmatprep.subr.bf16.mxu0 0
    %349 = vmatpush1.bf16.msra.mxu0 %v330
    %350 = vmatprep.subr.bf16.mxu0 0
    %351 = vmatpush1.bf16.msra.mxu0 %v329
    %352 = vmatprep.subr.bf16.mxu0 0
    %353 = vmatpush1.bf16.msra.mxu0 %v328
    %354 = vmatprep.subr.bf16.mxu0 0
    %355 = vmatpush1.bf16.msra.mxu0 %v327
    %356 = vmatprep.subr.bf16.mxu0 0
    %357 = vmatpush1.bf16.msra.mxu0 %v326
    %358 = vmatprep.subr.bf16.mxu0 0
    %359 = vmatpush2.bf16.msra.mxu0 0
    %360 = vmatprep.subr.bf16.mxu0 0
    %361 = vmatpush2.bf16.msra.mxu0 0
    %362 = vmatprep.subr.bf16.mxu0 0
    %363 = vmatpush2.bf16.msra.mxu0 0
    %364 = vmatprep.subr.bf16.mxu0 0
    %365 = vmatpush2.bf16.msra.mxu0 0
    %366 = vmatprep.subr.bf16.mxu0 0
    %367 = vmatpush2.bf16.msra.mxu0 0
    %368 = vmatprep.subr.bf16.mxu0 0
    %369 = vmatpush2.bf16.msra.mxu0 0
    %370 = vmatprep.subr.bf16.mxu0 0
    %371 = vmatpush2.bf16.msra.mxu0 0
    %372 = vmatprep.subr.bf16.mxu0 0
    %373 = vmatpush2.bf16.msra.mxu0 0
    %374 = vmatprep.mubr.bf16.mxu0 0
    %375 = vmatmul.mubr.bf16.gmra.mxu0 %v270
    %v376 = vpop.f32.mrf.mxu0
    %v377 = vadd.f32 %v292, %v376
    %v378 = vpop.f32.mrf.mxu0
    %v379 = vpop.f32.mrf.mxu0
    %v380 = vpop.f32.mrf.mxu0
    %381 = vdwg.mxu0
    %v382 = vmax.f32 %v377, 0.0
    %v383 = vpack.c.bf16 %v269, %v269
    %v384 = vld [vmem:[#allocation10] sm:$0xf]
    %v385 = vld [vmem:[#allocation10 + $0x4] sm:$0xf]
    %v386 = vld [vmem:[#allocation10 + $0x8] sm:$0xf]
    %v387 = vld [vmem:[#allocation10 + $0xc] sm:$0xf]
    %v388 = vld [vmem:[#allocation10 + $0x10] sm:$0xf]
    %v389 = vld [vmem:[#allocation10 + $0x14] sm:$0xf]
    %v390 = vld [vmem:[#allocation10 + $0x18] sm:$0xf]
    %v391 = vld [vmem:[#allocation10 + $0x1c] sm:$0xf]
    %v392 = vld [vmem:[#allocation10 + $0x20] sm:$0xf]
    %v393 = vld [vmem:[#allocation10 + $0x24] sm:$0xf]
    %v394 = vld [vmem:[#allocation10 + $0x28] sm:$0xf]
    %v395 = vld [vmem:[#allocation10 + $0x2c] sm:$0xf]
    %v396 = vld [vmem:[#allocation10 + $0x30] sm:$0xf]
    %v397 = vld [vmem:[#allocation10 + $0x34] sm:$0xf]
    %v398 = vld [vmem:[#allocation10 + $0x38] sm:$0xf]
    %v399 = vld [vmem:[#allocation10 + $0x3c] sm:$0xf]
    %v400 = vld [vmem:[%s7] sm:$0x1]
    %v402 = vlaneseq
    %v403 = vshrl.u32 %v402, 7
    %v404 = vsub.s32 0, %v403
    %v405 = vrot.slane %v400, %v404
    %v423 = vunpack.c.l.b16 %v384
    %v424 = vunpack.c.l.b16 %v385
    %v425 = vunpack.c.l.b16 %v386
    %v426 = vunpack.c.l.b16 %v387
    %v427 = vunpack.c.l.b16 %v388
    %v428 = vunpack.c.l.b16 %v389
    %v429 = vunpack.c.l.b16 %v390
    %v430 = vunpack.c.l.b16 %v391
    %v431 = vunpack.c.l.b16 %v392
    %v432 = vunpack.c.l.b16 %v393
    %v433 = vunpack.c.l.b16 %v394
    %v434 = vunpack.c.l.b16 %v395
    %v435 = vunpack.c.l.b16 %v396
    %v436 = vunpack.c.l.b16 %v397
    %v437 = vunpack.c.l.b16 %v398
    %v438 = vunpack.c.l.b16 %v399
    %v439 = vpack.c.b16 %v424, %v423
    %v440 = vpack.c.b16 %v426, %v425
    %v441 = vpack.c.b16 %v428, %v427
    %v442 = vpack.c.b16 %v430, %v429
    %v443 = vpack.c.b16 %v432, %v431
    %v444 = vpack.c.b16 %v434, %v433
    %v445 = vpack.c.b16 %v436, %v435
    %v446 = vpack.c.b16 %v438, %v437
    %455 = vmatprep.subr.bf16.mxu0 0
    %456 = vmatpush1.bf16.msra.mxu0 %v446
    %457 = vmatprep.subr.bf16.mxu0 0
    %458 = vmatpush1.bf16.msra.mxu0 %v445
    %459 = vmatprep.subr.bf16.mxu0 0
    %460 = vmatpush1.bf16.msra.mxu0 %v444
    %461 = vmatprep.subr.bf16.mxu0 0
    %462 = vmatpush1.bf16.msra.mxu0 %v443
    %463 = vmatprep.subr.bf16.mxu0 0
    %464 = vmatpush1.bf16.msra.mxu0 %v442
    %465 = vmatprep.subr.bf16.mxu0 0
    %466 = vmatpush1.bf16.msra.mxu0 %v441
    %467 = vmatprep.subr.bf16.mxu0 0
    %468 = vmatpush1.bf16.msra.mxu0 %v440
    %469 = vmatprep.subr.bf16.mxu0 0
    %470 = vmatpush1.bf16.msra.mxu0 %v439
    %471 = vmatprep.subr.bf16.mxu0 0
    %472 = vmatpush2.bf16.msra.mxu0 0
    %473 = vmatprep.subr.bf16.mxu0 0
    %474 = vmatpush2.bf16.msra.mxu0 0
    %475 = vmatprep.subr.bf16.mxu0 0
    %476 = vmatpush2.bf16.msra.mxu0 0
    %477 = vmatprep.subr.bf16.mxu0 0
    %478 = vmatpush2.bf16.msra.mxu0 0
    %479 = vmatprep.subr.bf16.mxu0 0
    %480 = vmatpush2.bf16.msra.mxu0 0
    %481 = vmatprep.subr.bf16.mxu0 0
    %482 = vmatpush2.bf16.msra.mxu0 0
    %483 = vmatprep.subr.bf16.mxu0 0
    %484 = vmatpush2.bf16.msra.mxu0 0
    %485 = vmatprep.subr.bf16.mxu0 0
    %486 = vmatpush2.bf16.msra.mxu0 0
    %487 = vmatprep.mubr.bf16.mxu0 0
    %488 = vmatmul.mubr.bf16.gmra.mxu0 %v383
    %v489 = vpop.f32.mrf.mxu0
    %v490 = vadd.f32 %v405, %v489
    %v491 = vpop.f32.mrf.mxu0
    %v492 = vpop.f32.mrf.mxu0
    %v493 = vpop.f32.mrf.mxu0
    %494 = vdwg.mxu0
    %v495 = vmax.f32 %v490, 0.0
    %v496 = vxor.u32 %v495, 2147483648
    %v497 = vmul.f32 %v496, 1.442695
    %v498 = vpow.pop %v497
    %v499 = vadd.f32 %v498, 1.0
    %v500 = vrcp.pop %v499
    %v501 = vmul.f32 1.0, %v500
    %v502 = vmul.f32 %v501, 0.7
    %v503 = vmul.f32 %v502, 0.7
    %v504 = vadd.f32 %v503, 0.001
    %v505 = vlog2.pop %v504
    %v506 = vmul.f32 %v505, 0.6931472
    %v507 = vsub.f32 -0.35524738, %v506
    %508 = vst [vmem:[#allocation14] sm:$0xff] %v507
    %v509 = vld [vmem:[#allocation5] sm:$0xff]
    %v510 = vmul.f32 %v504, %v509
    %v511 = vmul.f32 %v510, 1.442695
    %v512 = vpow.pop %v511
    %v513 = vmul.f32 %v382, %v512
    %v514 = vpack.c.bf16 %v513, %v513
    %v515 = vld [vmem:[#allocation11] sm:$0xf]
    %v516 = vld [vmem:[#allocation11 + $0x4] sm:$0xf]
    %v517 = vld [vmem:[#allocation11 + $0x8] sm:$0xf]
    %v518 = vld [vmem:[#allocation11 + $0xc] sm:$0xf]
    %v519 = vld [vmem:[#allocation11 + $0x10] sm:$0xf]
    %v520 = vld [vmem:[#allocation11 + $0x14] sm:$0xf]
    %v521 = vld [vmem:[#allocation11 + $0x18] sm:$0xf]
    %v522 = vld [vmem:[#allocation11 + $0x1c] sm:$0xf]
    %v523 = vld [vmem:[#allocation11 + $0x20] sm:$0xf]
    %v524 = vld [vmem:[#allocation11 + $0x24] sm:$0xf]
    %v525 = vld [vmem:[#allocation11 + $0x28] sm:$0xf]
    %v526 = vld [vmem:[#allocation11 + $0x2c] sm:$0xf]
    %v527 = vld [vmem:[#allocation11 + $0x30] sm:$0xf]
    %v528 = vld [vmem:[#allocation11 + $0x34] sm:$0xf]
    %v529 = vld [vmem:[#allocation11 + $0x38] sm:$0xf]
    %v530 = vld [vmem:[#allocation11 + $0x3c] sm:$0xf]
    %v531 = vld [vmem:[%s9] sm:$0x1]
    %v533 = vlaneseq
    %v534 = vshrl.u32 %v533, 7
    %v535 = vsub.s32 0, %v534
    %v536 = vrot.slane %v531, %v535
    %v554 = vunpack.c.l.b16 %v515
    %v555 = vunpack.c.l.b16 %v516
    %v556 = vunpack.c.l.b16 %v517
    %v557 = vunpack.c.l.b16 %v518
    %v558 = vunpack.c.l.b16 %v519
    %v559 = vunpack.c.l.b16 %v520
    %v560 = vunpack.c.l.b16 %v521
    %v561 = vunpack.c.l.b16 %v522
    %v562 = vunpack.c.l.b16 %v523
    %v563 = vunpack.c.l.b16 %v524
    %v564 = vunpack.c.l.b16 %v525
    %v565 = vunpack.c.l.b16 %v526
    %v566 = vunpack.c.l.b16 %v527
    %v567 = vunpack.c.l.b16 %v528
    %v568 = vunpack.c.l.b16 %v529
    %v569 = vunpack.c.l.b16 %v530
    %v570 = vpack.c.b16 %v555, %v554
    %v571 = vpack.c.b16 %v557, %v556
    %v572 = vpack.c.b16 %v559, %v558
    %v573 = vpack.c.b16 %v561, %v560
    %v574 = vpack.c.b16 %v563, %v562
    %v575 = vpack.c.b16 %v565, %v564
    %v576 = vpack.c.b16 %v567, %v566
    %v577 = vpack.c.b16 %v569, %v568
    %586 = vmatprep.subr.bf16.mxu0 0
    %587 = vmatpush1.bf16.msra.mxu0 %v577
    %588 = vmatprep.subr.bf16.mxu0 0
    %589 = vmatpush1.bf16.msra.mxu0 %v576
    %590 = vmatprep.subr.bf16.mxu0 0
    %591 = vmatpush1.bf16.msra.mxu0 %v575
    %592 = vmatprep.subr.bf16.mxu0 0
    %593 = vmatpush1.bf16.msra.mxu0 %v574
    %594 = vmatprep.subr.bf16.mxu0 0
    %595 = vmatpush1.bf16.msra.mxu0 %v573
    %596 = vmatprep.subr.bf16.mxu0 0
    %597 = vmatpush1.bf16.msra.mxu0 %v572
    %598 = vmatprep.subr.bf16.mxu0 0
    %599 = vmatpush1.bf16.msra.mxu0 %v571
    %600 = vmatprep.subr.bf16.mxu0 0
    %601 = vmatpush1.bf16.msra.mxu0 %v570
    %602 = vmatprep.subr.bf16.mxu0 0
    %603 = vmatpush2.bf16.msra.mxu0 0
    %604 = vmatprep.subr.bf16.mxu0 0
    %605 = vmatpush2.bf16.msra.mxu0 0
    %606 = vmatprep.subr.bf16.mxu0 0
    %607 = vmatpush2.bf16.msra.mxu0 0
    %608 = vmatprep.subr.bf16.mxu0 0
    %609 = vmatpush2.bf16.msra.mxu0 0
    %610 = vmatprep.subr.bf16.mxu0 0
    %611 = vmatpush2.bf16.msra.mxu0 0
    %612 = vmatprep.subr.bf16.mxu0 0
    %613 = vmatpush2.bf16.msra.mxu0 0
    %614 = vmatprep.subr.bf16.mxu0 0
    %615 = vmatpush2.bf16.msra.mxu0 0
    %616 = vmatprep.subr.bf16.mxu0 0
    %617 = vmatpush2.bf16.msra.mxu0 0
    %618 = vmatprep.mubr.bf16.mxu0 0
    %619 = vmatmul.mubr.bf16.gmra.mxu0 %v514
    %v620 = vpop.f32.mrf.mxu0
    %v621 = vadd.f32 %v536, %v620
    %v622 = vpop.f32.mrf.mxu0
    %v623 = vpop.f32.mrf.mxu0
    %v624 = vpop.f32.mrf.mxu0
    %625 = vdwg.mxu0
    %626 = vst [vmem:[#allocation13] sm:$0xff] %v621
    // Predicated region
    $region66: #{tpu_custom_call.1} parent=1 // pred_check
      _
    $region67: #{tpu_custom_call.1} parent=1 // pred_check_branch
      %628 = sbr.rel (0) target = $region69
    $region68: #{tpu_custom_call.1} parent=1 // pred_region
      %s630 = ssub.s32 128, 128
      %631 = vsyncadd [#allocation4], %s630
      %s633 = sshll.u32 [#allocation13], 4
      %s634 = int_to_ptr.vmem [resolvable:$true] %s633
      %636 = dma.vmem_to_hbm [thread:$0]  %s634, 128, %s10, [#allocation4]
    $region69: #{tpu_custom_call.1} parent=1 // pred_fallthru
      _
    // Predicated region
    $region70: #{tpu_custom_call.1} parent=1 // pred_check
      _
    $region71: #{tpu_custom_call.1} parent=1 // pred_check_branch
      %638 = sbr.rel (0) target = $region73
    $region72: #{tpu_custom_call.1} parent=1 // pred_region
      %s640 = ssub.s32 128, 128
      %641 = vsyncadd [#allocation15], %s640
      %s643 = sshll.u32 [#allocation14], 4
      %s644 = int_to_ptr.vmem [resolvable:$true] %s643
      %646 = dma.vmem_to_hbm [thread:$0]  %s644, 128, %s11, [#allocation15]
    $region73: #{tpu_custom_call.1} parent=1 // pred_fallthru
      _
    // Predicated region
    $region74: #{tpu_custom_call.1} parent=1 // pred_check
      _
    $region75: #{tpu_custom_call.1} parent=1 // pred_check_branch
      %648 = sbr.rel (0) target = $region77
    $region76: #{tpu_custom_call.1} parent=1 // pred_region
      %649 = dma.done [#allocation4], 128
    $region77: #{tpu_custom_call.1} parent=1 // pred_fallthru
      _
    // Predicated region
    $region78: #{tpu_custom_call.1} parent=1 // pred_check
      _
    $region79: #{tpu_custom_call.1} parent=1 // pred_check_branch
      %651 = sbr.rel (0) target = $region81
    $region80: #{tpu_custom_call.1} parent=1 // pred_region
      %652 = dma.done [#allocation15], 128
    $region81: #{tpu_custom_call.1} parent=1 // pred_fallthru
      _
    %653 = vsyncpa [#allocation3], 1
    %654 = vsyncpa [#allocation6], 1
    %655 = vsyncpa [#allocation9], 1
    %656 = vsyncpa [#allocation12], 1
    %657 = vsyncpa [#allocation4], 1
    %658 = vsyncpa [#allocation15], 1

</llo_original>
